<compile_context>
chip_gen: v5e
topology: v5e:2x2
jax: 0.10.0
libtpu: 0.0.40
codegen_flags: <defaults>
</compile_context>

<pallas_src>
import functools

import jax
import jax.numpy as jnp
from jax import lax
from jax.experimental import pallas as pl
from jax.experimental.pallas import tpu as pltpu


def fcn_head_kernel(x_ref, w1_ref, scale_ref, shift_ref, w2_ref, b2_ref, o_ref,
                    *, TH, W, Wp, Cint):
    # x_ref:     (1, 1, (TH+2)*Wp, Cin)  bf16  halo'd, width-padded row strip (flattened rows)
    # w1_ref:    (3, Cin, 3*Cint)        bf16  per-dy weights, dx taps stacked along columns
    # scale_ref: (1, Cint)               f32   fused BN scale = gamma / sqrt(var + eps)
    # shift_ref: (1, Cint)               f32   fused BN shift = beta - mean * scale
    # w2_ref:    (Cint, Cout_p)          bf16  1x1 conv weights, zero-padded to 128 lanes
    # b2_ref:    (1, Cout_p)             f32   1x1 conv bias, zero-padded
    # o_ref:     (1, 1, TH*W, Cout_p)    f32
    M = TH * Wp

    # --- 3x3 conv: 3 matmuls, one per dy; dx folded into the N axis of the weights. ---
    # Row slices start at multiples of Wp (a multiple of 16) -> aligned, no shuffle copies.
    acc = jnp.dot(x_ref[0, 0, 0:M, :], w1_ref[0],
                  preferred_element_type=jnp.float32)                  # (TH*Wp, 3*Cint)
    acc = acc + jnp.dot(x_ref[0, 0, Wp:Wp + M, :], w1_ref[1],
                        preferred_element_type=jnp.float32)
    acc = acc + jnp.dot(x_ref[0, 0, 2 * Wp:2 * Wp + M, :], w1_ref[2],
                        preferred_element_type=jnp.float32)

    # --- resolve the dx taps on the narrow (Cint-wide) result: 3 small shifted slices. ---
    acc = acc.reshape(TH, Wp, 3 * Cint)
    conv = (acc[:, 0:W,     0 * Cint:1 * Cint]
            + acc[:, 1:W + 1, 1 * Cint:2 * Cint]
            + acc[:, 2:W + 2, 2 * Cint:3 * Cint])                      # (TH, W, Cint) f32

    # --- BatchNorm (inference affine) + ReLU in f32. ---
    y = conv.reshape(TH * W, Cint)
    y = jnp.maximum(y * scale_ref[...] + shift_ref[...], 0.0)

    # Dropout2d(0.1): identity in inference mode.
    # TODO(synk): training-mode channel dropout (Dropout2d) is not implemented.

    # --- 1x1 conv: dense matmul over channels into a lane-dense (128-wide) output. ---
    out = jnp.dot(y.astype(w2_ref.dtype), w2_ref[...],
                  preferred_element_type=jnp.float32) + b2_ref[...]     # (TH*W, Cout_p)
    o_ref[0, 0] = out.astype(o_ref.dtype)


def fcn_head(x_nchw, w1, bn_gamma, bn_beta, bn_mean, bn_var, w2, b2, eps=1e-5):
    """FCNHead forward.

    x_nchw : (N, Cin, H, W)
    w1     : (Cint, Cin, 3, 3)   conv3x3 weight (PyTorch OIHW), no bias
    bn_*   : (Cint,)             BatchNorm2d params / running stats
    w2     : (Cout, Cint, 1, 1)  conv1x1 weight
    b2     : (Cout,)             conv1x1 bias
    returns (N, Cout, H, W) float32
    """
    N, Cin, H, W = x_nchw.shape
    Cint = w1.shape[0]
    Cout = w2.shape[0]

    # Strip height: tune per generation (bigger strips on v6e's 128 MiB VMEM, keep
    # 2*(TH+2)*Wp*Cin*2B well under ~24 MiB on v7x).  8 is plenty for the test size.
    TH = 8 if H % 8 == 0 else H
    S = H // TH
    Wp = ((W + 2 + 15) // 16) * 16            # width (incl. pad) rounded to sublane tile
    Cout_p = ((Cout + 127) // 128) * 128      # lane-dense output channels

    # ---- input: NCHW -> NHWC, bf16, zero pad, halo'd row strips (fused by XLA). ----
    x = jnp.transpose(x_nchw, (0, 2, 3, 1)).astype(jnp.bfloat16)          # (N, H, W, Cin)
    x_pad = jnp.pad(x, ((0, 0), (1, 1), (1, Wp - (W + 1)), (0, 0)))       # (N, H+2, Wp, Cin)
    x_strips = jnp.stack([x_pad[:, s * TH:s * TH + TH + 2] for s in range(S)], axis=1)
    x_strips = x_strips.reshape(N, S, (TH + 2) * Wp, Cin)                 # (N, S, (TH+2)*Wp, Cin)

    # ---- weights: (Cint,Cin,3,3) -> (dy, Cin, dx*Cint+cint), bf16. ----
    w1_k = jnp.transpose(w1, (2, 1, 3, 0)).reshape(3, Cin, 3 * Cint).astype(jnp.bfloat16)

    # Fold BatchNorm into per-channel scale/shift (f32).
    scale = (bn_gamma / jnp.sqrt(bn_var + eps)).astype(jnp.float32).reshape(1, Cint)
    shift = (bn_beta.astype(jnp.float32) - bn_mean.astype(jnp.float32) * scale[0]).reshape(1, Cint)

    # 1x1 conv weights/bias, zero-padded to Cout_p lanes.
    w2_mat = jnp.transpose(w2.reshape(Cout, Cint)).astype(jnp.bfloat16)   # (Cint, Cout)
    w2_p = jnp.zeros((Cint, Cout_p), jnp.bfloat16).at[:, :Cout].set(w2_mat)
    b2_p = jnp.zeros((1, Cout_p), jnp.float32).at[0, :Cout].set(b2.astype(jnp.float32))

    flops = 2 * N * S * (3 * TH * Wp * Cin * 3 * Cint + TH * W * Cint * Cout_p)
    bytes_accessed = (x_strips.size * 2 + w1_k.size * 2 + w2_p.size * 2
                      + scale.size * 4 + shift.size * 4 + b2_p.size * 4
                      + N * S * TH * W * Cout_p * 4)

    kernel = functools.partial(fcn_head_kernel, TH=TH, W=W, Wp=Wp, Cint=Cint)

    out_strips = pl.pallas_call(
        kernel,
        out_shape=jax.ShapeDtypeStruct((N, S, TH * W, Cout_p), jnp.float32),
        grid_spec=pltpu.PrefetchScalarGridSpec(
            num_scalar_prefetch=0,
            grid=(N, S),
            in_specs=[
                pl.BlockSpec((1, 1, (TH + 2) * Wp, Cin), lambda n, s: (n, s, 0, 0)),
                pl.BlockSpec((3, Cin, 3 * Cint), lambda n, s: (0, 0, 0)),
                pl.BlockSpec((1, Cint), lambda n, s: (0, 0)),
                pl.BlockSpec((1, Cint), lambda n, s: (0, 0)),
                pl.BlockSpec((Cint, Cout_p), lambda n, s: (0, 0)),
                pl.BlockSpec((1, Cout_p), lambda n, s: (0, 0)),
            ],
            out_specs=pl.BlockSpec((1, 1, TH * W, Cout_p), lambda n, s: (n, s, 0, 0)),
        ),
        compiler_params=pltpu.CompilerParams(
            dimension_semantics=("parallel", "parallel")),
        cost_estimate=pl.CostEstimate(flops=flops, transcendentals=0,
                                      bytes_accessed=bytes_accessed),
    )(x_strips, w1_k, scale, shift, w2_p, b2_p)

    # (N, S, TH*W, Cout_p) -> (N, H, W, Cout_p); drop padded channels; NHWC -> NCHW.
    out_nhwc = out_strips.reshape(N, S, TH, W, Cout_p).reshape(N, H, W, Cout_p)
    return jnp.transpose(out_nhwc[..., :Cout], (0, 3, 1, 2))


def _reference(x_nchw, w1, bn_gamma, bn_beta, bn_mean, bn_var, w2, b2, eps=1e-5):
    """Pure-JAX reference (lax.conv) matching the kernel's bf16 matmul / f32 accumulate."""
    y = lax.conv_general_dilated(
        x_nchw.astype(jnp.bfloat16), w1.astype(jnp.bfloat16),
        window_strides=(1, 1), padding=((1, 1), (1, 1)),
        dimension_numbers=("NCHW", "OIHW", "NCHW"),
        preferred_element_type=jnp.float32)
    scale = bn_gamma / jnp.sqrt(bn_var + eps)
    shift = bn_beta - bn_mean * scale
    y = y * scale[None, :, None, None] + shift[None, :, None, None]
    y = jnp.maximum(y, 0.0)
    y = lax.conv_general_dilated(
        y.astype(jnp.bfloat16), w2.astype(jnp.bfloat16),
        window_strides=(1, 1), padding=((0, 0), (0, 0)),
        dimension_numbers=("NCHW", "OIHW", "NCHW"),
        preferred_element_type=jnp.float32)
    return y + b2[None, :, None, None]


if __name__ == "__main__":
    key = jax.random.PRNGKey(0)
    N, Cin, H, W = 2, 16, 16, 16
    Cint = Cin // 4       # inter_channels = in_channels // 4
    Cout = 8              # out_channels

    ks = jax.random.split(key, 8)
    x = jax.random.normal(ks[0], (N, Cin, H, W), jnp.float32)
    w1 = jax.random.normal(ks[1], (Cint, Cin, 3, 3), jnp.float32) * 0.1
    bn_gamma = 1.0 + 0.1 * jax.random.normal(ks[2], (Cint,), jnp.float32)
    bn_beta = 0.1 * jax.random.normal(ks[3], (Cint,), jnp.float32)
    bn_mean = 0.1 * jax.random.normal(ks[4], (Cint,), jnp.float32)
    bn_var = jnp.abs(jax.random.normal(ks[5], (Cint,), jnp.float32)) + 0.5
    w2 = jax.random.normal(ks[6], (Cout, Cint, 1, 1), jnp.float32) * 0.1
    b2 = 0.1 * jax.random.normal(ks[7], (Cout,), jnp.float32)

    out = jax.jit(fcn_head)(x, w1, bn_gamma, bn_beta, bn_mean, bn_var, w2, b2)
    out = jax.block_until_ready(out)

    ref = jax.block_until_ready(
        _reference(x, w1, bn_gamma, bn_beta, bn_mean, bn_var, w2, b2))
    assert out.shape == (N, Cout, H, W)
    # bf16 matmuls with f32 accumulation -> slightly looser tolerance than pure f32.
    assert jnp.allclose(out, ref, rtol=2e-2, atol=2e-2), "mismatch vs reference"

    print("KERNEL_OK")
</pallas_src>

<mosaic_0001>
module attributes {stable_mosaic.version = 11 : i64} {
  func.func @fcn_head_kernel(%arg0: i32, %arg1: i32, %arg2: memref<1x1x320x16xbf16, #tpu.memory_space<vmem>>, %arg3: memref<3x16x12xbf16, #tpu.memory_space<vmem>>, %arg4: memref<1x4xf32, #tpu.memory_space<vmem>>, %arg5: memref<1x4xf32, #tpu.memory_space<vmem>>, %arg6: memref<4x128xbf16, #tpu.memory_space<vmem>>, %arg7: memref<1x128xf32, #tpu.memory_space<vmem>>, %arg8: memref<1x1x128x128xf32, #tpu.memory_space<vmem>>) attributes {dimension_semantics = [#tpu.dimension_semantics<parallel>, #tpu.dimension_semantics<parallel>], iteration_bounds = array<i64: 2, 2>, scalar_prefetch = 0 : i64, scratch_operands = 0 : i64, tpu.core_type = #tpu.core_type<tc>, window_params = [{transform_indices = @transform_0, window_bounds = array<i64: 1, 1, 320, 16>}, {pipeline_mode = #tpu.pipeline_mode<synchronous>, transform_indices = @transform_1, window_bounds = array<i64: 3, 16, 12>}, {pipeline_mode = #tpu.pipeline_mode<synchronous>, transform_indices = @transform_2, window_bounds = array<i64: 1, 4>}, {pipeline_mode = #tpu.pipeline_mode<synchronous>, transform_indices = @transform_3, window_bounds = array<i64: 1, 4>}, {pipeline_mode = #tpu.pipeline_mode<synchronous>, transform_indices = @transform_4, window_bounds = array<i64: 4, 128>}, {pipeline_mode = #tpu.pipeline_mode<synchronous>, transform_indices = @transform_5, window_bounds = array<i64: 1, 128>}, {transform_indices = @transform_6, window_bounds = array<i64: 1, 1, 128, 128>}]} {
    %c0 = arith.constant 0 : index
    %c0_0 = arith.constant 0 : index
    %c0_1 = arith.constant 0 : index
    %c0_2 = arith.constant 0 : index
    %0 = vector.load %arg2[%c0, %c0_0, %c0_1, %c0_2] : memref<1x1x320x16xbf16, #tpu.memory_space<vmem>>, vector<1x1x256x16xbf16>
    %1 = vector.shape_cast %0 : vector<1x1x256x16xbf16> to vector<256x16xbf16>
    %c0_3 = arith.constant 0 : index
    %c0_4 = arith.constant 0 : index
    %c0_5 = arith.constant 0 : index
    %2 = vector.load %arg3[%c0_3, %c0_4, %c0_5] : memref<3x16x12xbf16, #tpu.memory_space<vmem>>, vector<1x16x12xbf16>
    %3 = vector.shape_cast %2 : vector<1x16x12xbf16> to vector<16x12xbf16>
    %cst = arith.constant dense<0.000000e+00> : vector<256x12xf32>
    %4 = tpu.matmul %1, %3, %cst {dimension_numbers = #tpu.dot_dimension_numbers<[1], [0], [0], [1], [0, 0, 1, 1], [], []>} : vector<256x16xbf16>, vector<16x12xbf16>, vector<256x12xf32> -> vector<256x12xf32>
    %c0_6 = arith.constant 0 : index
    %c0_7 = arith.constant 0 : index
    %c32 = arith.constant 32 : index
    %c0_8 = arith.constant 0 : index
    %5 = vector.load %arg2[%c0_6, %c0_7, %c32, %c0_8] : memref<1x1x320x16xbf16, #tpu.memory_space<vmem>>, vector<1x1x256x16xbf16>
    %6 = vector.shape_cast %5 : vector<1x1x256x16xbf16> to vector<256x16xbf16>
    %c1 = arith.constant 1 : index
    %c0_9 = arith.constant 0 : index
    %c0_10 = arith.constant 0 : index
    %7 = vector.load %arg3[%c1, %c0_9, %c0_10] : memref<3x16x12xbf16, #tpu.memory_space<vmem>>, vector<1x16x12xbf16>
    %8 = vector.shape_cast %7 : vector<1x16x12xbf16> to vector<16x12xbf16>
    %cst_11 = arith.constant dense<0.000000e+00> : vector<256x12xf32>
    %9 = tpu.matmul %6, %8, %cst_11 {dimension_numbers = #tpu.dot_dimension_numbers<[1], [0], [0], [1], [0, 0, 1, 1], [], []>} : vector<256x16xbf16>, vector<16x12xbf16>, vector<256x12xf32> -> vector<256x12xf32>
    %10 = arith.addf %4, %9 : vector<256x12xf32>
    %c0_12 = arith.constant 0 : index
    %c0_13 = arith.constant 0 : index
    %c64 = arith.constant 64 : index
    %c0_14 = arith.constant 0 : index
    %11 = vector.load %arg2[%c0_12, %c0_13, %c64, %c0_14] : memref<1x1x320x16xbf16, #tpu.memory_space<vmem>>, vector<1x1x256x16xbf16>
    %12 = vector.shape_cast %11 : vector<1x1x256x16xbf16> to vector<256x16xbf16>
    %c2 = arith.constant 2 : index
    %c0_15 = arith.constant 0 : index
    %c0_16 = arith.constant 0 : index
    %13 = vector.load %arg3[%c2, %c0_15, %c0_16] : memref<3x16x12xbf16, #tpu.memory_space<vmem>>, vector<1x16x12xbf16>
    %14 = vector.shape_cast %13 : vector<1x16x12xbf16> to vector<16x12xbf16>
    %cst_17 = arith.constant dense<0.000000e+00> : vector<256x12xf32>
    %15 = tpu.matmul %12, %14, %cst_17 {dimension_numbers = #tpu.dot_dimension_numbers<[1], [0], [0], [1], [0, 0, 1, 1], [], []>} : vector<256x16xbf16>, vector<16x12xbf16>, vector<256x12xf32> -> vector<256x12xf32>
    %16 = arith.addf %10, %15 : vector<256x12xf32>
    %17 = vector.shape_cast %16 : vector<256x12xf32> to vector<8x32x12xf32>
    %18 = vector.extract_strided_slice %17 {offsets = [0, 0, 0], sizes = [8, 16, 4], strides = [1, 1, 1]} : vector<8x32x12xf32> to vector<8x16x4xf32>
    %19 = vector.extract_strided_slice %17 {offsets = [0, 1, 4], sizes = [8, 16, 4], strides = [1, 1, 1]} : vector<8x32x12xf32> to vector<8x16x4xf32>
    %20 = arith.addf %18, %19 : vector<8x16x4xf32>
    %21 = vector.extract_strided_slice %17 {offsets = [0, 2, 8], sizes = [8, 16, 4], strides = [1, 1, 1]} : vector<8x32x12xf32> to vector<8x16x4xf32>
    %22 = arith.addf %20, %21 : vector<8x16x4xf32>
    %23 = vector.shape_cast %22 : vector<8x16x4xf32> to vector<128x4xf32>
    %c0_18 = arith.constant 0 : index
    %c0_19 = arith.constant 0 : index
    %24 = vector.load %arg4[%c0_18, %c0_19] : memref<1x4xf32, #tpu.memory_space<vmem>>, vector<1x4xf32>
    %25 = vector.broadcast %24 : vector<1x4xf32> to vector<128x4xf32>
    %26 = arith.mulf %23, %25 : vector<128x4xf32>
    %c0_20 = arith.constant 0 : index
    %c0_21 = arith.constant 0 : index
    %27 = vector.load %arg5[%c0_20, %c0_21] : memref<1x4xf32, #tpu.memory_space<vmem>>, vector<1x4xf32>
    %28 = vector.broadcast %27 : vector<1x4xf32> to vector<128x4xf32>
    %29 = arith.addf %26, %28 : vector<128x4xf32>
    %cst_22 = arith.constant 0.000000e+00 : f32
    %30 = vector.broadcast %cst_22 : f32 to vector<128x4xf32>
    %31 = arith.maximumf %29, %30 : vector<128x4xf32>
    %32 = arith.truncf %31 : vector<128x4xf32> to vector<128x4xbf16>
    %c0_23 = arith.constant 0 : index
    %c0_24 = arith.constant 0 : index
    %33 = vector.load %arg6[%c0_23, %c0_24] : memref<4x128xbf16, #tpu.memory_space<vmem>>, vector<4x128xbf16>
    %cst_25 = arith.constant dense<0.000000e+00> : vector<128x128xf32>
    %34 = tpu.matmul %32, %33, %cst_25 {dimension_numbers = #tpu.dot_dimension_numbers<[1], [0], [0], [1], [0, 0, 1, 1], [], []>} : vector<128x4xbf16>, vector<4x128xbf16>, vector<128x128xf32> -> vector<128x128xf32>
    %c0_26 = arith.constant 0 : index
    %c0_27 = arith.constant 0 : index
    %35 = vector.load %arg7[%c0_26, %c0_27] : memref<1x128xf32, #tpu.memory_space<vmem>>, vector<1x128xf32>
    %36 = vector.broadcast %35 : vector<1x128xf32> to vector<128x128xf32>
    %37 = arith.addf %34, %36 : vector<128x128xf32>
    %c0_28 = arith.constant 0 : index
    %c0_29 = arith.constant 0 : index
    %c0_30 = arith.constant 0 : index
    %c0_31 = arith.constant 0 : index
    %38 = vector.load %arg8[%c0_28, %c0_29, %c0_30, %c0_31] : memref<1x1x128x128xf32, #tpu.memory_space<vmem>>, vector<1x1x128x128xf32>
    %39 = vector.shape_cast %38 : vector<1x1x128x128xf32> to vector<128x128xf32>
    %40 = vector.shape_cast %37 : vector<128x128xf32> to vector<1x1x128x128xf32>
    tpu.vector_store %arg8[%c0_28, %c0_29, %c0_30, %c0_31], %40 {strides = array<i32>} : memref<1x1x128x128xf32, #tpu.memory_space<vmem>>, vector<1x1x128x128xf32>,
    return
  }
  func.func @transform_0(%arg0: i32, %arg1: i32) -> (i32, i32, i32, i32) {
    %c0_i32 = arith.constant 0 : i32
    %c0_i32_0 = arith.constant 0 : i32
    %c0_i32_1 = arith.constant 0 : i32
    return %arg0, %arg1, %c0_i32, %c0_i32_0 : i32, i32, i32, i32
  }
  func.func @transform_1(%arg0: i32, %arg1: i32) -> (i32, i32, i32) {
    %c0_i32 = arith.constant 0 : i32
    %c0_i32_0 = arith.constant 0 : i32
    %c0_i32_1 = arith.constant 0 : i32
    %c0_i32_2 = arith.constant 0 : i32
    return %c0_i32, %c0_i32_0, %c0_i32_1 : i32, i32, i32
  }
  func.func @transform_2(%arg0: i32, %arg1: i32) -> (i32, i32) {
    %c0_i32 = arith.constant 0 : i32
    %c0_i32_0 = arith.constant 0 : i32
    %c0_i32_1 = arith.constant 0 : i32
    return %c0_i32, %c0_i32_0 : i32, i32
  }
  func.func @transform_3(%arg0: i32, %arg1: i32) -> (i32, i32) {
    %c0_i32 = arith.constant 0 : i32
    %c0_i32_0 = arith.constant 0 : i32
    %c0_i32_1 = arith.constant 0 : i32
    return %c0_i32, %c0_i32_0 : i32, i32
  }
  func.func @transform_4(%arg0: i32, %arg1: i32) -> (i32, i32) {
    %c0_i32 = arith.constant 0 : i32
    %c0_i32_0 = arith.constant 0 : i32
    %c0_i32_1 = arith.constant 0 : i32
    return %c0_i32, %c0_i32_0 : i32, i32
  }
  func.func @transform_5(%arg0: i32, %arg1: i32) -> (i32, i32) {
    %c0_i32 = arith.constant 0 : i32
    %c0_i32_0 = arith.constant 0 : i32
    %c0_i32_1 = arith.constant 0 : i32
    return %c0_i32, %c0_i32_0 : i32, i32
  }
  func.func @transform_6(%arg0: i32, %arg1: i32) -> (i32, i32, i32, i32) {
    %c0_i32 = arith.constant 0 : i32
    %c0_i32_0 = arith.constant 0 : i32
    %c0_i32_1 = arith.constant 0 : i32
    return %arg0, %arg1, %c0_i32, %c0_i32_0 : i32, i32, i32, i32
  }
}

</mosaic_0001>

<llo_original>
// kernel: fcn_head.1
$region0: #{fcn_head.1}
  #allocation0 [shape = 'u32[]', space=smem, size = 0x4, offset = 0x4, fixed_abs, tag = 'smem constant byte address 0x4 - core index']
  #allocation1 [shape = 'u32[72,128]{1,0:T(1,128)}', space=vmem, size = 0x9000, scoped, tag = 'internal scratch']
  %s0 = inlined_call_operand.vmem [shape: bf16[2,2,320,16], index: 0, kind: input, shape index: {}]
  %s1 = inlined_call_operand.vmem [shape: bf16[3,16,12], index: 1, kind: input, shape index: {}]
  %s2 = inlined_call_operand.vmem [shape: f32[1,4], index: 2, kind: input, shape index: {}]
  %s3 = inlined_call_operand.vmem [shape: f32[1,4], index: 3, kind: input, shape index: {}]
  %s4 = inlined_call_operand.vmem [shape: bf16[4,128], index: 4, kind: input, shape index: {}]
  %s5 = inlined_call_operand.vmem [shape: f32[1,128], index: 5, kind: input, shape index: {}]
  %s6 = inlined_call_operand.vmem [shape: f32[2,2,128,128], index: 6, kind: output, shape index: {}]
  %s7 = sld [smem:[#allocation0]]
  $region57: #{fcn_head.1} parent=0
    _
  %s9 = ssub.s32 1, %s7
  %s10 = scalar_select 0, %s9, %s7
  loop: start=0, step=1, limit=6
  $region2: #{fcn_head.1} parent=0 // loop_pre_header
    _
  $region3: #{fcn_head.1} parent=0 // loop_header
    %s12 = sphi 0, %s16
    %p13 = scmp.ge.s32.totalorder %s12, 6
    %s19 = sphi 0, %s31
    %s20 = sphi 0, %s27
    %s21 = sphi 0, %s19
    %s22 = sphi 0, %s20
    %s23 = sphi 0, %s21
    %s24 = sphi 0, %s22
    %s36 = sphi 0, %s38
    %s39 = sphi 0, %s36
    %s40 = sphi 0, %s39
    %s56 = sphi 0, %s40
    %s60 = sphi 0, %s60
    %s62 = sphi 0, %s60
    %s63 = sphi 0, %s62
    %s77 = sphi 0, %s63
    %s81 = sphi 0, %s81
    %s83 = sphi 0, %s81
    %s84 = sphi 0, %s83
    %s98 = sphi 0, %s84
    %s102 = sphi 0, %s102
    %s104 = sphi 0, %s102
    %s105 = sphi 0, %s104
    %s119 = sphi 0, %s105
    %s123 = sphi 0, %s123
    %s125 = sphi 0, %s123
    %s126 = sphi 0, %s125
    %s140 = sphi 0, %s126
    %s144 = sphi 0, %s144
    %s146 = sphi 0, %s144
    %s147 = sphi 0, %s146
    %s161 = sphi 0, %s147
    %s169 = sphi 0, %s171
    %s172 = sphi 0, %s169
    %s173 = sphi 0, %s172
    %s189 = sphi 0, %s173
  $region4: #{fcn_head.1} parent=0 // loop_header_branch
    %15 = sbr.rel (%p13) target = $region8
  $region5: #{fcn_head.1} parent=0 // loop_body
    %s17 = ssub.s32 %s12, 1
    %s18 = ssub.s32 %s12, 2
    %s25 = sadd.s32 1, %s20
    %p26 = scmp.ge.s32.totalorder %s25, 2
    %s27 = scalar_select %p26, 0, %s25
    %s28 = sadd.s32 1, %s19
    %s29 = scalar_select %p26, %s28, %s19
    %p30 = scmp.ge.s32.totalorder %s29, 2
    %s31 = scalar_select %p30, 0, %s29
    %s32 = ssub.s32 %s19, %s31
    %s33 = ssub.s32 %s20, %s27
    %s34 = sor.u32 %s32, %s33
    %p35 = scmp.eq.s32.totalorder %s34, 0
    %s37 = sadd.s32 %s36, 1
    %s38 = scalar_select %p35, %s36, %s37
    %p41 = pneg %p35
    %p42 = scmp.eq.s32.totalorder %s12, 3
    %p43 = por %p41, %p42
    %p44 = scmp.ne.s32.totalorder %s36, %s39
    %p45 = scmp.eq.s32.totalorder %s12, 0
    %p46 = por %p44, %p45
    %p47 = scmp.ne.s32.totalorder %s36, %s39
    %p48 = scmp.eq.s32.totalorder %s17, 3
    %p49 = por %p47, %p48
    %p50 = scmp.ne.s32.totalorder %s39, %s40
    %p51 = scmp.eq.s32.totalorder %s17, 0
    %p52 = por %p50, %p51
    %p53 = scmp.ne.s32.totalorder %s39, %s40
    %p54 = scmp.eq.s32.totalorder %s18, 3
    %p55 = por %p53, %p54
    %p57 = scmp.ne.s32.totalorder %s40, %s56
    %p58 = scmp.eq.s32.totalorder %s18, 0
    %p59 = por %p57, %p58
    %s61 = sadd.s32 %s60, 1
    %p64 = scmp.eq.s32.totalorder %s12, 3
    %p65 = scmp.ne.s32.totalorder %s60, %s62
    %p66 = scmp.eq.s32.totalorder %s12, 0
    %p67 = por %p65, %p66
    %p68 = scmp.ne.s32.totalorder %s60, %s62
    %p69 = scmp.eq.s32.totalorder %s17, 3
    %p70 = por %p68, %p69
    %p71 = scmp.ne.s32.totalorder %s62, %s63
    %p72 = scmp.eq.s32.totalorder %s17, 0
    %p73 = por %p71, %p72
    %p74 = scmp.ne.s32.totalorder %s62, %s63
    %p75 = scmp.eq.s32.totalorder %s18, 3
    %p76 = por %p74, %p75
    %p78 = scmp.ne.s32.totalorder %s63, %s77
    %p79 = scmp.eq.s32.totalorder %s18, 0
    %p80 = por %p78, %p79
    %s82 = sadd.s32 %s81, 1
    %p85 = scmp.eq.s32.totalorder %s12, 3
    %p86 = scmp.ne.s32.totalorder %s81, %s83
    %p87 = scmp.eq.s32.totalorder %s12, 0
    %p88 = por %p86, %p87
    %p89 = scmp.ne.s32.totalorder %s81, %s83
    %p90 = scmp.eq.s32.totalorder %s17, 3
    %p91 = por %p89, %p90
    %p92 = scmp.ne.s32.totalorder %s83, %s84
    %p93 = scmp.eq.s32.totalorder %s17, 0
    %p94 = por %p92, %p93
    %p95 = scmp.ne.s32.totalorder %s83, %s84
    %p96 = scmp.eq.s32.totalorder %s18, 3
    %p97 = por %p95, %p96
    %p99 = scmp.ne.s32.totalorder %s84, %s98
    %p100 = scmp.eq.s32.totalorder %s18, 0
    %p101 = por %p99, %p100
    %s103 = sadd.s32 %s102, 1
    %p106 = scmp.eq.s32.totalorder %s12, 3
    %p107 = scmp.ne.s32.totalorder %s102, %s104
    %p108 = scmp.eq.s32.totalorder %s12, 0
    %p109 = por %p107, %p108
    %p110 = scmp.ne.s32.totalorder %s102, %s104
    %p111 = scmp.eq.s32.totalorder %s17, 3
    %p112 = por %p110, %p111
    %p113 = scmp.ne.s32.totalorder %s104, %s105
    %p114 = scmp.eq.s32.totalorder %s17, 0
    %p115 = por %p113, %p114
    %p116 = scmp.ne.s32.totalorder %s104, %s105
    %p117 = scmp.eq.s32.totalorder %s18, 3
    %p118 = por %p116, %p117
    %p120 = scmp.ne.s32.totalorder %s105, %s119
    %p121 = scmp.eq.s32.totalorder %s18, 0
    %p122 = por %p120, %p121
    %s124 = sadd.s32 %s123, 1
    %p127 = scmp.eq.s32.totalorder %s12, 3
    %p128 = scmp.ne.s32.totalorder %s123, %s125
    %p129 = scmp.eq.s32.totalorder %s12, 0
    %p130 = por %p128, %p129
    %p131 = scmp.ne.s32.totalorder %s123, %s125
    %p132 = scmp.eq.s32.totalorder %s17, 3
    %p133 = por %p131, %p132
    %p134 = scmp.ne.s32.totalorder %s125, %s126
    %p135 = scmp.eq.s32.totalorder %s17, 0
    %p136 = por %p134, %p135
    %p137 = scmp.ne.s32.totalorder %s125, %s126
    %p138 = scmp.eq.s32.totalorder %s18, 3
    %p139 = por %p137, %p138
    %p141 = scmp.ne.s32.totalorder %s126, %s140
    %p142 = scmp.eq.s32.totalorder %s18, 0
    %p143 = por %p141, %p142
    %s145 = sadd.s32 %s144, 1
    %p148 = scmp.eq.s32.totalorder %s12, 3
    %p149 = scmp.ne.s32.totalorder %s144, %s146
    %p150 = scmp.eq.s32.totalorder %s12, 0
    %p151 = por %p149, %p150
    %p152 = scmp.ne.s32.totalorder %s144, %s146
    %p153 = scmp.eq.s32.totalorder %s17, 3
    %p154 = por %p152, %p153
    %p155 = scmp.ne.s32.totalorder %s146, %s147
    %p156 = scmp.eq.s32.totalorder %s17, 0
    %p157 = por %p155, %p156
    %p158 = scmp.ne.s32.totalorder %s146, %s147
    %p159 = scmp.eq.s32.totalorder %s18, 3
    %p160 = por %p158, %p159
    %p162 = scmp.ne.s32.totalorder %s147, %s161
    %p163 = scmp.eq.s32.totalorder %s18, 0
    %p164 = por %p162, %p163
    %s165 = ssub.s32 %s19, %s31
    %s166 = ssub.s32 %s20, %s27
    %s167 = sor.u32 %s165, %s166
    %p168 = scmp.eq.s32.totalorder %s167, 0
    %s170 = sadd.s32 %s169, 1
    %s171 = scalar_select %p168, %s169, %s170
    %p174 = pneg %p168
    %p175 = scmp.eq.s32.totalorder %s12, 3
    %p176 = por %p174, %p175
    %p177 = scmp.ne.s32.totalorder %s169, %s172
    %p178 = scmp.eq.s32.totalorder %s12, 0
    %p179 = por %p177, %p178
    %p180 = scmp.ne.s32.totalorder %s169, %s172
    %p181 = scmp.eq.s32.totalorder %s17, 3
    %p182 = por %p180, %p181
    %p183 = scmp.ne.s32.totalorder %s172, %s173
    %p184 = scmp.eq.s32.totalorder %s17, 0
    %p185 = por %p183, %p184
    %p186 = scmp.ne.s32.totalorder %s172, %s173
    %p187 = scmp.eq.s32.totalorder %s18, 3
    %p188 = por %p186, %p187
    %p190 = scmp.ne.s32.totalorder %s173, %s189
    %p191 = scmp.eq.s32.totalorder %s18, 0
    %p192 = por %p190, %p191
    %p193 = scmp.le.s32.totalorder 1, %s12
    %p194 = scmp.lt.s32.totalorder %s12, 5
    %p195 = pnand %p193, %p194
    %p196 = pneg %p195
    // Predicated region
    $region9: #{fcn_head.1} parent=5 // pred_check
      _
    $region10: #{fcn_head.1} parent=5 // pred_check_branch
      %198 = sbr.rel (%p195) target = $region12
    $region11: #{fcn_head.1} parent=5 // pred_region
      %s199 = ssub.s32 %s12, 1
      // Predicated region
      $region13: #{fcn_head.1} parent=11 // pred_check
        %p200 = pneg %p73
      $region14: #{fcn_head.1} parent=11 // pred_check_branch
        %202 = sbr.rel (%p200) target = $region16
      $region15: #{fcn_head.1} parent=11 // pred_region
        _
      $region16: #{fcn_head.1} parent=11 // pred_fallthru
        _
      // Predicated region
      $region17: #{fcn_head.1} parent=11 // pred_check
        %p203 = pneg %p94
      $region18: #{fcn_head.1} parent=11 // pred_check_branch
        %205 = sbr.rel (%p203) target = $region20
      $region19: #{fcn_head.1} parent=11 // pred_region
        _
      $region20: #{fcn_head.1} parent=11 // pred_fallthru
        _
      // Predicated region
      $region21: #{fcn_head.1} parent=11 // pred_check
        %p206 = pneg %p115
      $region22: #{fcn_head.1} parent=11 // pred_check_branch
        %208 = sbr.rel (%p206) target = $region24
      $region23: #{fcn_head.1} parent=11 // pred_region
        _
      $region24: #{fcn_head.1} parent=11 // pred_fallthru
        _
      // Predicated region
      $region25: #{fcn_head.1} parent=11 // pred_check
        %p209 = pneg %p136
      $region26: #{fcn_head.1} parent=11 // pred_check_branch
        %211 = sbr.rel (%p209) target = $region28
      $region27: #{fcn_head.1} parent=11 // pred_region
        _
      $region28: #{fcn_head.1} parent=11 // pred_fallthru
        _
      // Predicated region
      $region29: #{fcn_head.1} parent=11 // pred_check
        %p212 = pneg %p157
      $region30: #{fcn_head.1} parent=11 // pred_check_branch
        %214 = sbr.rel (%p212) target = $region32
      $region31: #{fcn_head.1} parent=11 // pred_region
        _
      $region32: #{fcn_head.1} parent=11 // pred_fallthru
        _
    $region12: #{fcn_head.1} parent=5 // pred_fallthru
      _
    %p215 = scmp.lt.s32.totalorder %s12, 4
    // Predicated region
    $region33: #{fcn_head.1} parent=5 // pred_check
      %p216 = pneg %p215
    $region34: #{fcn_head.1} parent=5 // pred_check_branch
      %218 = sbr.rel (%p216) target = $region36
    $region35: #{fcn_head.1} parent=5 // pred_region
      // Predicated region
      $region37: #{fcn_head.1} parent=35 // pred_check
        %p219 = pneg %p46
      $region38: #{fcn_head.1} parent=35 // pred_check_branch
        %221 = sbr.rel (%p219) target = $region40
      $region39: #{fcn_head.1} parent=35 // pred_region
        %p222 = scmp.lt.s32.totalorder %s19, 1
        %s223 = scalar_select %p222, %s19, 1
        %p224 = scmp.lt.s32.totalorder %s20, 1
        %s225 = scalar_select %p224, %s20, 1
        %s226 = smul.addr %s225, 40
        %s227 = smul.addr %s223, 80
        %s228 = sadd.s32 %s226, %s227
        %s229 = smul.addr %s228, 4
        %s230 = scalar_lea.vmem %s0, %s229
      $region40: #{fcn_head.1} parent=35 // pred_fallthru
        _
    $region36: #{fcn_head.1} parent=5 // pred_fallthru
      _
    %p231 = scmp.le.s32.totalorder 1, %s12
    %p232 = scmp.lt.s32.totalorder %s12, 5
    %p233 = pnand %p231, %p232
    %p234 = pneg %p233
    // Predicated region
    $region41: #{fcn_head.1} parent=5 // pred_check
      _
    $region42: #{fcn_head.1} parent=5 // pred_check_branch
      %236 = sbr.rel (%p233) target = $region44
    $region43: #{fcn_head.1} parent=5 // pred_region
      %s237 = ssub.s32 %s12, 1
      %p238 = scmp.lt.s32.totalorder %s21, 1
      %s239 = scalar_select %p238, %s21, 1
      %p240 = scmp.lt.s32.totalorder %s22, 1
      %s241 = scalar_select %p240, %s22, 1
      %s242 = smul.addr %s241, 40
      %s243 = smul.addr %s239, 80
      %s244 = sadd.s32 %s242, %s243
      %s245 = smul.addr %s244, 4
      %s246 = scalar_lea.vmem %s0, %s245
      %p247 = pneg %p52
      %p248 = pneg %p49
      %p249 = pneg %p73
      %p250 = pneg %p70
      %p251 = pneg %p94
      %p252 = pneg %p91
      %p253 = pneg %p115
      %p254 = pneg %p112
      %p255 = pneg %p136
      %p256 = pneg %p133
      %p257 = pneg %p157
      %p258 = pneg %p154
      %p259 = pneg %p185
      %p260 = pneg %p182
      %p261 = scmp.lt.s32.totalorder %s21, 1
      %s262 = scalar_select %p261, %s21, 1
      %p263 = scmp.lt.s32.totalorder %s22, 1
      %s264 = scalar_select %p263, %s22, 1
      %s265 = smul.addr %s264, 16
      %s266 = smul.addr %s262, 32
      %s267 = sadd.s32 %s265, %s266
      %s268 = smul.addr %s267, 8
      %s269 = scalar_lea.vmem %s6, %s268
      %p270 = scmp.lt.s32.totalorder %s21, 1
      %s271 = scalar_select %p270, %s21, 1
      %p272 = scmp.lt.s32.totalorder %s22, 1
      %s273 = scalar_select %p272, %s22, 1
      %s274 = smul.addr %s273, 40
      %s275 = smul.addr %s271, 80
      %s276 = sadd.s32 %s274, %s275
      %s277 = smul.addr %s276, 4
      %s278 = scalar_lea.vmem %s0, %s277
      %p279 = scmp.lt.s32.totalorder %s21, 1
      %s280 = scalar_select %p279, %s21, 1
      %p281 = scmp.lt.s32.totalorder %s22, 1
      %s282 = scalar_select %p281, %s22, 1
      %s283 = smul.addr %s282, 16
      %s284 = smul.addr %s280, 32
      %s285 = sadd.s32 %s283, %s284
      %s286 = smul.addr %s285, 8
      %s287 = scalar_lea.vmem %s6, %s286
      %v289 = vld [vmem:[%s278] sm:$0xf]
      %v290 = vld [vmem:[%s278 + $0x4] sm:$0xf]
      %v291 = vld [vmem:[%s278 + $0x8] sm:$0xf]
      %v292 = vld [vmem:[%s278 + $0xc] sm:$0xf]
      %v293 = vld [vmem:[%s278 + $0x10] sm:$0xf]
      %v294 = vld [vmem:[%s278 + $0x14] sm:$0xf]
      %v295 = vld [vmem:[%s278 + $0x18] sm:$0xf]
      %v296 = vld [vmem:[%s278 + $0x1c] sm:$0xf]
      %v297 = vld [vmem:[%s278 + $0x20] sm:$0xf]
      %v298 = vld [vmem:[%s278 + $0x24] sm:$0xf]
      %v299 = vld [vmem:[%s278 + $0x28] sm:$0xf]
      %v300 = vld [vmem:[%s278 + $0x2c] sm:$0xf]
      %v301 = vld [vmem:[%s278 + $0x30] sm:$0xf]
      %v302 = vld [vmem:[%s278 + $0x34] sm:$0xf]
      %v303 = vld [vmem:[%s278 + $0x38] sm:$0xf]
      %v304 = vld [vmem:[%s278 + $0x3c] sm:$0xf]
      %v305 = vld [vmem:[%s278 + $0x40] sm:$0xf]
      %v306 = vld [vmem:[%s278 + $0x44] sm:$0xf]
      %v307 = vld [vmem:[%s278 + $0x48] sm:$0xf]
      %v308 = vld [vmem:[%s278 + $0x4c] sm:$0xf]
      %v309 = vld [vmem:[%s278 + $0x50] sm:$0xf]
      %v310 = vld [vmem:[%s278 + $0x54] sm:$0xf]
      %v311 = vld [vmem:[%s278 + $0x58] sm:$0xf]
      %v312 = vld [vmem:[%s278 + $0x5c] sm:$0xf]
      %v313 = vld [vmem:[%s278 + $0x60] sm:$0xf]
      %v314 = vld [vmem:[%s278 + $0x64] sm:$0xf]
      %v315 = vld [vmem:[%s278 + $0x68] sm:$0xf]
      %v316 = vld [vmem:[%s278 + $0x6c] sm:$0xf]
      %v317 = vld [vmem:[%s278 + $0x70] sm:$0xf]
      %v318 = vld [vmem:[%s278 + $0x74] sm:$0xf]
      %v319 = vld [vmem:[%s278 + $0x78] sm:$0xf]
      %v320 = vld [vmem:[%s278 + $0x7c] sm:$0xf]
      %v321 = vld [vmem:[%s1] sm:$0xf]
      %v322 = vld [vmem:[%s1 + $0x4] sm:$0xf]
      %v323 = vld [vmem:[%s278 + $0x80] sm:$0xf]
      %v324 = vld [vmem:[%s278 + $0x84] sm:$0xf]
      %v325 = vld [vmem:[%s278 + $0x88] sm:$0xf]
      %v326 = vld [vmem:[%s278 + $0x8c] sm:$0xf]
      %s327 = scalar_lea.vmem %s1, 8
      %v328 = vld [vmem:[%s327] sm:$0xf]
      %v329 = vld [vmem:[%s327 + $0x4] sm:$0xf]
      %v362 = vunpack.c.l.b16 %v293
      %v363 = vunpack.c.l.b16 %v294
      %v364 = vunpack.c.l.b16 %v295
      %v365 = vunpack.c.l.b16 %v296
      %v366 = vunpack.c.l.b16 %v297
      %v367 = vunpack.c.l.b16 %v298
      %v368 = vunpack.c.l.b16 %v299
      %v369 = vunpack.c.l.b16 %v300
      %v370 = vunpack.c.l.b16 %v301
      %v371 = vunpack.c.l.b16 %v302
      %v372 = vunpack.c.l.b16 %v303
      %v373 = vunpack.c.l.b16 %v304
      %v374 = vunpack.c.l.b16 %v305
      %v375 = vunpack.c.l.b16 %v306
      %v376 = vunpack.c.l.b16 %v307
      %v377 = vunpack.c.l.b16 %v308
      %v378 = vunpack.c.l.b16 %v309
      %v379 = vunpack.c.l.b16 %v310
      %v380 = vunpack.c.l.b16 %v311
      %v381 = vunpack.c.l.b16 %v312
      %v382 = vunpack.c.l.b16 %v313
      %v383 = vunpack.c.l.b16 %v314
      %v384 = vunpack.c.l.b16 %v315
      %v385 = vunpack.c.l.b16 %v316
      %v386 = vunpack.c.l.b16 %v317
      %v387 = vunpack.c.l.b16 %v318
      %v388 = vunpack.c.l.b16 %v319
      %v389 = vunpack.c.l.b16 %v320
      %v390 = vunpack.c.l.b16 %v323
      %v391 = vunpack.c.l.b16 %v324
      %v392 = vunpack.c.l.b16 %v325
      %v393 = vunpack.c.l.b16 %v326
      %v394 = vpack.c.b16 %v363, %v362
      %v395 = vpack.c.b16 %v365, %v364
      %v396 = vpack.c.b16 %v367, %v366
      %v397 = vpack.c.b16 %v369, %v368
      %v398 = vpack.c.b16 %v371, %v370
      %v399 = vpack.c.b16 %v373, %v372
      %v400 = vpack.c.b16 %v375, %v374
      %v401 = vpack.c.b16 %v377, %v376
      %v402 = vpack.c.b16 %v379, %v378
      %v403 = vpack.c.b16 %v381, %v380
      %v404 = vpack.c.b16 %v383, %v382
      %v405 = vpack.c.b16 %v385, %v384
      %v406 = vpack.c.b16 %v387, %v386
      %v407 = vpack.c.b16 %v389, %v388
      %v408 = vpack.c.b16 %v391, %v390
      %v409 = vpack.c.b16 %v393, %v392
      %v412 = vunpack.c.l.b16 %v328
      %v413 = vunpack.c.l.b16 %v329
      %v414 = vpack.c.b16 %v413, %v412
      %vm416 = vcmask 130048
      %v418 = vsel %vm416, %v394, 0
      %v421 = vsel %vm416, %v395, 0
      %v424 = vsel %vm416, %v396, 0
      %v427 = vsel %vm416, %v397, 0
      %v430 = vsel %vm416, %v398, 0
      %v433 = vsel %vm416, %v399, 0
      %v436 = vsel %vm416, %v400, 0
      %v439 = vsel %vm416, %v401, 0
      %v442 = vsel %vm416, %v402, 0
      %v445 = vsel %vm416, %v403, 0
      %v448 = vsel %vm416, %v404, 0
      %v451 = vsel %vm416, %v405, 0
      %v454 = vsel %vm416, %v406, 0
      %v457 = vsel %vm416, %v407, 0
      %v460 = vsel %vm416, %v408, 0
      %v463 = vsel %vm416, %v409, 0
      %465 = vmatpush.bf16.msra.mxu0 0
      %466 = vmatpush.bf16.msra.mxu0 0
      %467 = vmatpush.bf16.msra.mxu0 0
      %468 = vmatpush.bf16.msra.mxu0 0
      %469 = vmatpush.bf16.msra.mxu0 0
      %470 = vmatpush.bf16.msra.mxu0 0
      %471 = vmatpush.bf16.msra.mxu0 0
      %472 = vmatpush.bf16.msra.mxu0 %v414
      %473 = vmatmul.bf16.gmra.mxu0 %v418
      %v474 = vpop.f32.mrf.mxu0
      %v475 = vadd.f32 0.0, %v474
      %v476 = vpop.f32.mrf.mxu0
      %v477 = vadd.f32 0.0, %v476
      %478 = vmatmul.bf16.gmra.mxu0 %v421
      %v479 = vpop.f32.mrf.mxu0
      %v480 = vadd.f32 0.0, %v479
      %v481 = vpop.f32.mrf.mxu0
      %482 = vmatmul.bf16.gmra.mxu0 %v424
      %v483 = vpop.f32.mrf.mxu0
      %v484 = vadd.f32 0.0, %v483
      %v485 = vpop.f32.mrf.mxu0
      %v486 = vadd.f32 0.0, %v485
      %487 = vmatmul.bf16.gmra.mxu0 %v427
      %v488 = vpop.f32.mrf.mxu0
      %v489 = vadd.f32 0.0, %v488
      %v490 = vpop.f32.mrf.mxu0
      %491 = vmatmul.bf16.gmra.mxu0 %v430
      %v492 = vpop.f32.mrf.mxu0
      %v493 = vadd.f32 0.0, %v492
      %v494 = vpop.f32.mrf.mxu0
      %v495 = vadd.f32 0.0, %v494
      %496 = vmatmul.bf16.gmra.mxu0 %v433
      %v497 = vpop.f32.mrf.mxu0
      %v498 = vadd.f32 0.0, %v497
      %v499 = vpop.f32.mrf.mxu0
      %500 = vmatmul.bf16.gmra.mxu0 %v436
      %v501 = vpop.f32.mrf.mxu0
      %v502 = vadd.f32 0.0, %v501
      %v503 = vpop.f32.mrf.mxu0
      %v504 = vadd.f32 0.0, %v503
      %505 = vmatmul.bf16.gmra.mxu0 %v439
      %v506 = vpop.f32.mrf.mxu0
      %v507 = vadd.f32 0.0, %v506
      %v508 = vpop.f32.mrf.mxu0
      %509 = vmatmul.bf16.gmra.mxu0 %v442
      %v510 = vpop.f32.mrf.mxu0
      %v511 = vadd.f32 0.0, %v510
      %v512 = vpop.f32.mrf.mxu0
      %v513 = vadd.f32 0.0, %v512
      %514 = vmatmul.bf16.gmra.mxu0 %v445
      %v515 = vpop.f32.mrf.mxu0
      %v516 = vadd.f32 0.0, %v515
      %v517 = vpop.f32.mrf.mxu0
      %518 = vmatmul.bf16.gmra.mxu0 %v448
      %v519 = vpop.f32.mrf.mxu0
      %v520 = vadd.f32 0.0, %v519
      %v521 = vpop.f32.mrf.mxu0
      %v522 = vadd.f32 0.0, %v521
      %523 = vmatmul.bf16.gmra.mxu0 %v451
      %v524 = vpop.f32.mrf.mxu0
      %v525 = vadd.f32 0.0, %v524
      %v526 = vpop.f32.mrf.mxu0
      %527 = vmatmul.bf16.gmra.mxu0 %v454
      %v528 = vpop.f32.mrf.mxu0
      %v529 = vadd.f32 0.0, %v528
      %v530 = vpop.f32.mrf.mxu0
      %v531 = vadd.f32 0.0, %v530
      %532 = vmatmul.bf16.gmra.mxu0 %v457
      %v533 = vpop.f32.mrf.mxu0
      %v534 = vadd.f32 0.0, %v533
      %v535 = vpop.f32.mrf.mxu0
      %536 = vmatmul.bf16.gmra.mxu0 %v460
      %v537 = vpop.f32.mrf.mxu0
      %v538 = vadd.f32 0.0, %v537
      %v539 = vpop.f32.mrf.mxu0
      %v540 = vadd.f32 0.0, %v539
      %541 = vmatmul.bf16.gmra.mxu0 %v463
      %v542 = vpop.f32.mrf.mxu0
      %v543 = vadd.f32 0.0, %v542
      %v544 = vpop.f32.mrf.mxu0
      %545 = vdwg.mxu0
      %v550 = vunpack.c.l.b16 %v289
      %v551 = vunpack.c.l.b16 %v290
      %v552 = vunpack.c.l.b16 %v291
      %v553 = vunpack.c.l.b16 %v292
      %v554 = vpack.c.b16 %v551, %v550
      %v555 = vpack.c.b16 %v553, %v552
      %v558 = vunpack.c.l.b16 %v321
      %v559 = vunpack.c.l.b16 %v322
      %v560 = vpack.c.b16 %v559, %v558
      %v563 = vsel %vm416, %v554, 0
      %v566 = vsel %vm416, %v555, 0
      %568 = vmatpush.bf16.msra.mxu0 0
      %569 = vmatpush.bf16.msra.mxu0 0
      %570 = vmatpush.bf16.msra.mxu0 0
      %571 = vmatpush.bf16.msra.mxu0 0
      %572 = vmatpush.bf16.msra.mxu0 0
      %573 = vmatpush.bf16.msra.mxu0 0
      %574 = vmatpush.bf16.msra.mxu0 0
      %575 = vmatpush.bf16.msra.mxu0 %v560
      %576 = vmatmul.bf16.gmra.mxu0 %v563
      %v577 = vpop.f32.mrf.mxu0
      %v578 = vadd.f32 %v475, %v577
      %v579 = vpop.f32.mrf.mxu0
      %v580 = vadd.f32 %v477, %v579
      %581 = vmatmul.bf16.gmra.mxu0 %v566
      %v582 = vpop.f32.mrf.mxu0
      %v583 = vadd.f32 %v480, %v582
      %v584 = vpop.f32.mrf.mxu0
      %585 = vmatmul.bf16.gmra.mxu0 %v418
      %v586 = vpop.f32.mrf.mxu0
      %v587 = vadd.f32 %v484, %v586
      %v588 = vpop.f32.mrf.mxu0
      %v589 = vadd.f32 %v486, %v588
      %590 = vmatmul.bf16.gmra.mxu0 %v421
      %v591 = vpop.f32.mrf.mxu0
      %v592 = vadd.f32 %v489, %v591
      %v593 = vpop.f32.mrf.mxu0
      %594 = vmatmul.bf16.gmra.mxu0 %v424
      %v595 = vpop.f32.mrf.mxu0
      %v596 = vadd.f32 %v493, %v595
      %v597 = vpop.f32.mrf.mxu0
      %v598 = vadd.f32 %v495, %v597
      %599 = vmatmul.bf16.gmra.mxu0 %v427
      %v600 = vpop.f32.mrf.mxu0
      %v601 = vadd.f32 %v498, %v600
      %v602 = vpop.f32.mrf.mxu0
      %603 = vmatmul.bf16.gmra.mxu0 %v430
      %v604 = vpop.f32.mrf.mxu0
      %v605 = vadd.f32 %v502, %v604
      %v606 = vpop.f32.mrf.mxu0
      %v607 = vadd.f32 %v504, %v606
      %608 = vmatmul.bf16.gmra.mxu0 %v433
      %v609 = vpop.f32.mrf.mxu0
      %v610 = vadd.f32 %v507, %v609
      %v611 = vpop.f32.mrf.mxu0
      %612 = vmatmul.bf16.gmra.mxu0 %v436
      %v613 = vpop.f32.mrf.mxu0
      %v614 = vadd.f32 %v511, %v613
      %v615 = vpop.f32.mrf.mxu0
      %v616 = vadd.f32 %v513, %v615
      %617 = vmatmul.bf16.gmra.mxu0 %v439
      %v618 = vpop.f32.mrf.mxu0
      %v619 = vadd.f32 %v516, %v618
      %v620 = vpop.f32.mrf.mxu0
      %621 = vmatmul.bf16.gmra.mxu0 %v442
      %v622 = vpop.f32.mrf.mxu0
      %v623 = vadd.f32 %v520, %v622
      %v624 = vpop.f32.mrf.mxu0
      %v625 = vadd.f32 %v522, %v624
      %626 = vmatmul.bf16.gmra.mxu0 %v445
      %v627 = vpop.f32.mrf.mxu0
      %v628 = vadd.f32 %v525, %v627
      %v629 = vpop.f32.mrf.mxu0
      %630 = vmatmul.bf16.gmra.mxu0 %v448
      %v631 = vpop.f32.mrf.mxu0
      %v632 = vadd.f32 %v529, %v631
      %v633 = vpop.f32.mrf.mxu0
      %v634 = vadd.f32 %v531, %v633
      %635 = vmatmul.bf16.gmra.mxu0 %v451
      %v636 = vpop.f32.mrf.mxu0
      %v637 = vadd.f32 %v534, %v636
      %v638 = vpop.f32.mrf.mxu0
      %639 = vmatmul.bf16.gmra.mxu0 %v454
      %v640 = vpop.f32.mrf.mxu0
      %v641 = vadd.f32 %v538, %v640
      %v642 = vpop.f32.mrf.mxu0
      %v643 = vadd.f32 %v540, %v642
      %644 = vmatmul.bf16.gmra.mxu0 %v457
      %v645 = vpop.f32.mrf.mxu0
      %v646 = vadd.f32 %v543, %v645
      %v647 = vpop.f32.mrf.mxu0
      %648 = vdwg.mxu0
      %v649 = vld [vmem:[%s278 + $0x20] sm:$0xf]
      %v650 = vld [vmem:[%s278 + $0x24] sm:$0xf]
      %v651 = vld [vmem:[%s278 + $0x28] sm:$0xf]
      %v652 = vld [vmem:[%s278 + $0x2c] sm:$0xf]
      %v653 = vld [vmem:[%s278 + $0x30] sm:$0xf]
      %v654 = vld [vmem:[%s278 + $0x34] sm:$0xf]
      %v655 = vld [vmem:[%s278 + $0x38] sm:$0xf]
      %v656 = vld [vmem:[%s278 + $0x3c] sm:$0xf]
      %v657 = vld [vmem:[%s278 + $0x40] sm:$0xf]
      %v658 = vld [vmem:[%s278 + $0x44] sm:$0xf]
      %v659 = vld [vmem:[%s278 + $0x48] sm:$0xf]
      %v660 = vld [vmem:[%s278 + $0x4c] sm:$0xf]
      %v661 = vld [vmem:[%s278 + $0x50] sm:$0xf]
      %v662 = vld [vmem:[%s278 + $0x54] sm:$0xf]
      %v663 = vld [vmem:[%s278 + $0x58] sm:$0xf]
      %v664 = vld [vmem:[%s278 + $0x5c] sm:$0xf]
      %v665 = vld [vmem:[%s278 + $0x60] sm:$0xf]
      %v666 = vld [vmem:[%s278 + $0x64] sm:$0xf]
      %v667 = vld [vmem:[%s278 + $0x68] sm:$0xf]
      %v668 = vld [vmem:[%s278 + $0x6c] sm:$0xf]
      %v669 = vld [vmem:[%s278 + $0x70] sm:$0xf]
      %v670 = vld [vmem:[%s278 + $0x74] sm:$0xf]
      %v671 = vld [vmem:[%s278 + $0x78] sm:$0xf]
      %v672 = vld [vmem:[%s278 + $0x7c] sm:$0xf]
      %v673 = vld [vmem:[%s278 + $0x80] sm:$0xf]
      %v674 = vld [vmem:[%s278 + $0x84] sm:$0xf]
      %v675 = vld [vmem:[%s278 + $0x88] sm:$0xf]
      %v676 = vld [vmem:[%s278 + $0x8c] sm:$0xf]
      %v677 = vld [vmem:[%s278 + $0x90] sm:$0xf]
      %v678 = vld [vmem:[%s278 + $0x94] sm:$0xf]
      %v679 = vld [vmem:[%s278 + $0x98] sm:$0xf]
      %v680 = vld [vmem:[%s278 + $0x9c] sm:$0xf]
      %s681 = scalar_lea.vmem %s1, 16
      %v682 = vld [vmem:[%s681] sm:$0xf]
      %v683 = vld [vmem:[%s681 + $0x4] sm:$0xf]
      %v716 = vunpack.c.l.b16 %v649
      %v717 = vunpack.c.l.b16 %v650
      %v718 = vunpack.c.l.b16 %v651
      %v719 = vunpack.c.l.b16 %v652
      %v720 = vunpack.c.l.b16 %v653
      %v721 = vunpack.c.l.b16 %v654
      %v722 = vunpack.c.l.b16 %v655
      %v723 = vunpack.c.l.b16 %v656
      %v724 = vunpack.c.l.b16 %v657
      %v725 = vunpack.c.l.b16 %v658
      %v726 = vunpack.c.l.b16 %v659
      %v727 = vunpack.c.l.b16 %v660
      %v728 = vunpack.c.l.b16 %v661
      %v729 = vunpack.c.l.b16 %v662
      %v730 = vunpack.c.l.b16 %v663
      %v731 = vunpack.c.l.b16 %v664
      %v732 = vunpack.c.l.b16 %v665
      %v733 = vunpack.c.l.b16 %v666
      %v734 = vunpack.c.l.b16 %v667
      %v735 = vunpack.c.l.b16 %v668
      %v736 = vunpack.c.l.b16 %v669
      %v737 = vunpack.c.l.b16 %v670
      %v738 = vunpack.c.l.b16 %v671
      %v739 = vunpack.c.l.b16 %v672
      %v740 = vunpack.c.l.b16 %v673
      %v741 = vunpack.c.l.b16 %v674
      %v742 = vunpack.c.l.b16 %v675
      %v743 = vunpack.c.l.b16 %v676
      %v744 = vunpack.c.l.b16 %v677
      %v745 = vunpack.c.l.b16 %v678
      %v746 = vunpack.c.l.b16 %v679
      %v747 = vunpack.c.l.b16 %v680
      %v748 = vpack.c.b16 %v717, %v716
      %v749 = vpack.c.b16 %v719, %v718
      %v750 = vpack.c.b16 %v721, %v720
      %v751 = vpack.c.b16 %v723, %v722
      %v752 = vpack.c.b16 %v725, %v724
      %v753 = vpack.c.b16 %v727, %v726
      %v754 = vpack.c.b16 %v729, %v728
      %v755 = vpack.c.b16 %v731, %v730
      %v756 = vpack.c.b16 %v733, %v732
      %v757 = vpack.c.b16 %v735, %v734
      %v758 = vpack.c.b16 %v737, %v736
      %v759 = vpack.c.b16 %v739, %v738
      %v760 = vpack.c.b16 %v741, %v740
      %v761 = vpack.c.b16 %v743, %v742
      %v762 = vpack.c.b16 %v745, %v744
      %v763 = vpack.c.b16 %v747, %v746
      %v766 = vunpack.c.l.b16 %v682
      %v767 = vunpack.c.l.b16 %v683
      %v768 = vpack.c.b16 %v767, %v766
      %v771 = vsel %vm416, %v748, 0
      %v774 = vsel %vm416, %v749, 0
      %v777 = vsel %vm416, %v750, 0
      %v780 = vsel %vm416, %v751, 0
      %v783 = vsel %vm416, %v752, 0
      %v786 = vsel %vm416, %v753, 0
      %v789 = vsel %vm416, %v754, 0
      %v792 = vsel %vm416, %v755, 0
      %v795 = vsel %vm416, %v756, 0
      %v798 = vsel %vm416, %v757, 0
      %v801 = vsel %vm416, %v758, 0
      %v804 = vsel %vm416, %v759, 0
      %v807 = vsel %vm416, %v760, 0
      %v810 = vsel %vm416, %v761, 0
      %v813 = vsel %vm416, %v762, 0
      %v816 = vsel %vm416, %v763, 0
      %818 = vmatpush.bf16.msra.mxu0 0
      %819 = vmatpush.bf16.msra.mxu0 0
      %820 = vmatpush.bf16.msra.mxu0 0
      %821 = vmatpush.bf16.msra.mxu0 0
      %822 = vmatpush.bf16.msra.mxu0 0
      %823 = vmatpush.bf16.msra.mxu0 0
      %824 = vmatpush.bf16.msra.mxu0 0
      %825 = vmatpush.bf16.msra.mxu0 %v768
      %826 = vmatmul.bf16.gmra.mxu0 %v771
      %v827 = vpop.f32.mrf.mxu0
      %v828 = vadd.f32 0.0, %v827
      %v829 = vpop.f32.mrf.mxu0
      %v830 = vadd.f32 0.0, %v829
      %831 = vmatmul.bf16.gmra.mxu0 %v774
      %v832 = vpop.f32.mrf.mxu0
      %v833 = vadd.f32 0.0, %v832
      %v834 = vpop.f32.mrf.mxu0
      %835 = vmatmul.bf16.gmra.mxu0 %v777
      %v836 = vpop.f32.mrf.mxu0
      %v837 = vadd.f32 0.0, %v836
      %v838 = vpop.f32.mrf.mxu0
      %v839 = vadd.f32 0.0, %v838
      %840 = vmatmul.bf16.gmra.mxu0 %v780
      %v841 = vpop.f32.mrf.mxu0
      %v842 = vadd.f32 0.0, %v841
      %v843 = vpop.f32.mrf.mxu0
      %844 = vmatmul.bf16.gmra.mxu0 %v783
      %v845 = vpop.f32.mrf.mxu0
      %v846 = vadd.f32 0.0, %v845
      %v847 = vpop.f32.mrf.mxu0
      %v848 = vadd.f32 0.0, %v847
      %849 = vmatmul.bf16.gmra.mxu0 %v786
      %v850 = vpop.f32.mrf.mxu0
      %v851 = vadd.f32 0.0, %v850
      %v852 = vpop.f32.mrf.mxu0
      %853 = vmatmul.bf16.gmra.mxu0 %v789
      %v854 = vpop.f32.mrf.mxu0
      %v855 = vadd.f32 0.0, %v854
      %v856 = vpop.f32.mrf.mxu0
      %v857 = vadd.f32 0.0, %v856
      %858 = vmatmul.bf16.gmra.mxu0 %v792
      %v859 = vpop.f32.mrf.mxu0
      %v860 = vadd.f32 0.0, %v859
      %v861 = vpop.f32.mrf.mxu0
      %862 = vmatmul.bf16.gmra.mxu0 %v795
      %v863 = vpop.f32.mrf.mxu0
      %v864 = vadd.f32 0.0, %v863
      %v865 = vpop.f32.mrf.mxu0
      %v866 = vadd.f32 0.0, %v865
      %867 = vmatmul.bf16.gmra.mxu0 %v798
      %v868 = vpop.f32.mrf.mxu0
      %v869 = vadd.f32 0.0, %v868
      %v870 = vpop.f32.mrf.mxu0
      %871 = vmatmul.bf16.gmra.mxu0 %v801
      %v872 = vpop.f32.mrf.mxu0
      %v873 = vadd.f32 0.0, %v872
      %v874 = vpop.f32.mrf.mxu0
      %v875 = vadd.f32 0.0, %v874
      %876 = vmatmul.bf16.gmra.mxu0 %v804
      %v877 = vpop.f32.mrf.mxu0
      %v878 = vadd.f32 0.0, %v877
      %v879 = vpop.f32.mrf.mxu0
      %880 = vmatmul.bf16.gmra.mxu0 %v807
      %v881 = vpop.f32.mrf.mxu0
      %v882 = vadd.f32 0.0, %v881
      %v883 = vpop.f32.mrf.mxu0
      %v884 = vadd.f32 0.0, %v883
      %885 = vmatmul.bf16.gmra.mxu0 %v810
      %v886 = vpop.f32.mrf.mxu0
      %v887 = vadd.f32 0.0, %v886
      %v888 = vpop.f32.mrf.mxu0
      %889 = vmatmul.bf16.gmra.mxu0 %v813
      %v890 = vpop.f32.mrf.mxu0
      %v891 = vadd.f32 0.0, %v890
      %v892 = vpop.f32.mrf.mxu0
      %v893 = vadd.f32 0.0, %v892
      %894 = vmatmul.bf16.gmra.mxu0 %v816
      %v895 = vpop.f32.mrf.mxu0
      %v896 = vadd.f32 0.0, %v895
      %v897 = vpop.f32.mrf.mxu0
      %898 = vdwg.mxu0
      %v899 = vadd.f32 %v578, %v828
      %v900 = vadd.f32 %v580, %v830
      %v901 = vadd.f32 %v583, %v833
      %v902 = vadd.f32 %v587, %v837
      %v903 = vadd.f32 %v589, %v839
      %v904 = vadd.f32 %v592, %v842
      %v905 = vadd.f32 %v596, %v846
      %v906 = vadd.f32 %v598, %v848
      %v907 = vadd.f32 %v601, %v851
      %v908 = vadd.f32 %v605, %v855
      %v909 = vadd.f32 %v607, %v857
      %v910 = vadd.f32 %v610, %v860
      %v911 = vadd.f32 %v614, %v864
      %v912 = vadd.f32 %v616, %v866
      %v913 = vadd.f32 %v619, %v869
      %v914 = vadd.f32 %v623, %v873
      %v915 = vadd.f32 %v625, %v875
      %v916 = vadd.f32 %v628, %v878
      %v917 = vadd.f32 %v632, %v882
      %v918 = vadd.f32 %v634, %v884
      %v919 = vadd.f32 %v637, %v887
      %v920 = vadd.f32 %v641, %v891
      %v921 = vadd.f32 %v643, %v893
      %v922 = vadd.f32 %v646, %v896
      %vm947 = vcmask 1046528
      %v948 = vrot.slane %v899, 1
      %v949 = vrot.slane %v900, 1
      %v950 = vsel %vm947, %v948, %v949
      %v951 = vrot.slane %v901, 1
      %v952 = vsel %vm947, %v949, %v951
      %v953 = vrot.slane %v902, 1
      %v954 = vrot.slane %v903, 1
      %v955 = vsel %vm947, %v953, %v954
      %v956 = vrot.slane %v904, 1
      %v957 = vsel %vm947, %v954, %v956
      %v958 = vrot.slane %v905, 1
      %v959 = vrot.slane %v906, 1
      %v960 = vsel %vm947, %v958, %v959
      %v961 = vrot.slane %v907, 1
      %v962 = vsel %vm947, %v959, %v961
      %v963 = vrot.slane %v908, 1
      %v964 = vrot.slane %v909, 1
      %v965 = vsel %vm947, %v963, %v964
      %v966 = vrot.slane %v910, 1
      %v967 = vsel %vm947, %v964, %v966
      %v968 = vrot.slane %v911, 1
      %v969 = vrot.slane %v912, 1
      %v970 = vsel %vm947, %v968, %v969
      %v971 = vrot.slane %v913, 1
      %v972 = vsel %vm947, %v969, %v971
      %v973 = vrot.slane %v914, 1
      %v974 = vrot.slane %v915, 1
      %v975 = vsel %vm947, %v973, %v974
      %v976 = vrot.slane %v916, 1
      %v977 = vsel %vm947, %v974, %v976
      %v978 = vrot.slane %v917, 1
      %v979 = vrot.slane %v918, 1
      %v980 = vsel %vm947, %v978, %v979
      %v981 = vrot.slane %v919, 1
      %v982 = vsel %vm947, %v979, %v981
      %v983 = vrot.slane %v920, 1
      %v984 = vrot.slane %v921, 1
      %v985 = vsel %vm947, %v983, %v984
      %v986 = vrot.slane %v922, 1
      %v987 = vsel %vm947, %v984, %v986
      %988 = vrot.lane.b32.xlu0 %v950, 124
      %v989 = vpop.permute.xlu0 %988
      %990 = vrot.lane.b32.xlu0 %v952, 124
      %v991 = vpop.permute.xlu0 %990
      %992 = vrot.lane.b32.xlu0 %v955, 124
      %v993 = vpop.permute.xlu0 %992
      %994 = vrot.lane.b32.xlu0 %v957, 124
      %v995 = vpop.permute.xlu0 %994
      %996 = vrot.lane.b32.xlu0 %v960, 124
      %v997 = vpop.permute.xlu0 %996
      %998 = vrot.lane.b32.xlu0 %v962, 124
      %v999 = vpop.permute.xlu0 %998
      %1000 = vrot.lane.b32.xlu0 %v965, 124
      %v1001 = vpop.permute.xlu0 %1000
      %1002 = vrot.lane.b32.xlu0 %v967, 124
      %v1003 = vpop.permute.xlu0 %1002
      %1004 = vrot.lane.b32.xlu0 %v970, 124
      %v1005 = vpop.permute.xlu0 %1004
      %1006 = vrot.lane.b32.xlu0 %v972, 124
      %v1007 = vpop.permute.xlu0 %1006
      %1008 = vrot.lane.b32.xlu0 %v975, 124
      %v1009 = vpop.permute.xlu0 %1008
      %1010 = vrot.lane.b32.xlu0 %v977, 124
      %v1011 = vpop.permute.xlu0 %1010
      %1012 = vrot.lane.b32.xlu0 %v980, 124
      %v1013 = vpop.permute.xlu0 %1012
      %1014 = vrot.lane.b32.xlu0 %v982, 124
      %v1015 = vpop.permute.xlu0 %1014
      %1016 = vrot.lane.b32.xlu0 %v985, 124
      %v1017 = vpop.permute.xlu0 %1016
      %1018 = vrot.lane.b32.xlu0 %v987, 124
      %v1019 = vpop.permute.xlu0 %1018
      %v1036 = vadd.f32 %v899, %v989
      %v1037 = vadd.f32 %v900, %v991
      %v1038 = vadd.f32 %v902, %v993
      %v1039 = vadd.f32 %v903, %v995
      %v1040 = vadd.f32 %v905, %v997
      %v1041 = vadd.f32 %v906, %v999
      %v1042 = vadd.f32 %v908, %v1001
      %v1043 = vadd.f32 %v909, %v1003
      %v1044 = vadd.f32 %v911, %v1005
      %v1045 = vadd.f32 %v912, %v1007
      %v1046 = vadd.f32 %v914, %v1009
      %v1047 = vadd.f32 %v915, %v1011
      %v1048 = vadd.f32 %v917, %v1013
      %v1049 = vadd.f32 %v918, %v1015
      %v1050 = vadd.f32 %v920, %v1017
      %v1051 = vadd.f32 %v921, %v1019
      %vm1052 = vcmask 1045504
      %v1053 = vrot.slane %v899, 2
      %v1054 = vrot.slane %v900, 2
      %v1055 = vsel %vm1052, %v1053, %v1054
      %v1056 = vrot.slane %v901, 2
      %v1057 = vsel %vm1052, %v1054, %v1056
      %v1058 = vrot.slane %v902, 2
      %v1059 = vrot.slane %v903, 2
      %v1060 = vsel %vm1052, %v1058, %v1059
      %v1061 = vrot.slane %v904, 2
      %v1062 = vsel %vm1052, %v1059, %v1061
      %v1063 = vrot.slane %v905, 2
      %v1064 = vrot.slane %v906, 2
      %v1065 = vsel %vm1052, %v1063, %v1064
      %v1066 = vrot.slane %v907, 2
      %v1067 = vsel %vm1052, %v1064, %v1066
      %v1068 = vrot.slane %v908, 2
      %v1069 = vrot.slane %v909, 2
      %v1070 = vsel %vm1052, %v1068, %v1069
      %v1071 = vrot.slane %v910, 2
      %v1072 = vsel %vm1052, %v1069, %v1071
      %v1073 = vrot.slane %v911, 2
      %v1074 = vrot.slane %v912, 2
      %v1075 = vsel %vm1052, %v1073, %v1074
      %v1076 = vrot.slane %v913, 2
      %v1077 = vsel %vm1052, %v1074, %v1076
      %v1078 = vrot.slane %v914, 2
      %v1079 = vrot.slane %v915, 2
      %v1080 = vsel %vm1052, %v1078, %v1079
      %v1081 = vrot.slane %v916, 2
      %v1082 = vsel %vm1052, %v1079, %v1081
      %v1083 = vrot.slane %v917, 2
      %v1084 = vrot.slane %v918, 2
      %v1085 = vsel %vm1052, %v1083, %v1084
      %v1086 = vrot.slane %v919, 2
      %v1087 = vsel %vm1052, %v1084, %v1086
      %v1088 = vrot.slane %v920, 2
      %v1089 = vrot.slane %v921, 2
      %v1090 = vsel %vm1052, %v1088, %v1089
      %v1091 = vrot.slane %v922, 2
      %v1092 = vsel %vm1052, %v1089, %v1091
      %1093 = vrot.lane.b32.xlu0 %v1055, 120
      %v1094 = vpop.permute.xlu0 %1093
      %1095 = vrot.lane.b32.xlu0 %v1057, 120
      %v1096 = vpop.permute.xlu0 %1095
      %1097 = vrot.lane.b32.xlu0 %v1060, 120
      %v1098 = vpop.permute.xlu0 %1097
      %1099 = vrot.lane.b32.xlu0 %v1062, 120
      %v1100 = vpop.permute.xlu0 %1099
      %1101 = vrot.lane.b32.xlu0 %v1065, 120
      %v1102 = vpop.permute.xlu0 %1101
      %1103 = vrot.lane.b32.xlu0 %v1067, 120
      %v1104 = vpop.permute.xlu0 %1103
      %1105 = vrot.lane.b32.xlu0 %v1070, 120
      %v1106 = vpop.permute.xlu0 %1105
      %1107 = vrot.lane.b32.xlu0 %v1072, 120
      %v1108 = vpop.permute.xlu0 %1107
      %1109 = vrot.lane.b32.xlu0 %v1075, 120
      %v1110 = vpop.permute.xlu0 %1109
      %1111 = vrot.lane.b32.xlu0 %v1077, 120
      %v1112 = vpop.permute.xlu0 %1111
      %1113 = vrot.lane.b32.xlu0 %v1080, 120
      %v1114 = vpop.permute.xlu0 %1113
      %1115 = vrot.lane.b32.xlu0 %v1082, 120
      %v1116 = vpop.permute.xlu0 %1115
      %1117 = vrot.lane.b32.xlu0 %v1085, 120
      %v1118 = vpop.permute.xlu0 %1117
      %1119 = vrot.lane.b32.xlu0 %v1087, 120
      %v1120 = vpop.permute.xlu0 %1119
      %1121 = vrot.lane.b32.xlu0 %v1090, 120
      %v1122 = vpop.permute.xlu0 %1121
      %1123 = vrot.lane.b32.xlu0 %v1092, 120
      %v1124 = vpop.permute.xlu0 %1123
      %v1141 = vadd.f32 %v1036, %v1094
      %v1142 = vadd.f32 %v1037, %v1096
      %v1143 = vadd.f32 %v1038, %v1098
      %v1144 = vadd.f32 %v1039, %v1100
      %v1145 = vadd.f32 %v1040, %v1102
      %v1146 = vadd.f32 %v1041, %v1104
      %v1147 = vadd.f32 %v1042, %v1106
      %v1148 = vadd.f32 %v1043, %v1108
      %v1149 = vadd.f32 %v1044, %v1110
      %v1150 = vadd.f32 %v1045, %v1112
      %v1151 = vadd.f32 %v1046, %v1114
      %v1152 = vadd.f32 %v1047, %v1116
      %v1153 = vadd.f32 %v1048, %v1118
      %v1154 = vadd.f32 %v1049, %v1120
      %v1155 = vadd.f32 %v1050, %v1122
      %v1156 = vadd.f32 %v1051, %v1124
      %v1157 = vld [vmem:[%s2] sm:$0x1]
      %v1159 = vperm.slane %v1157, 0
      %v1161 = vmul.f32 %v1141, %v1159
      %v1162 = vmul.f32 %v1142, %v1159
      %v1163 = vmul.f32 %v1143, %v1159
      %v1164 = vmul.f32 %v1144, %v1159
      %v1165 = vmul.f32 %v1145, %v1159
      %v1166 = vmul.f32 %v1146, %v1159
      %v1167 = vmul.f32 %v1147, %v1159
      %v1168 = vmul.f32 %v1148, %v1159
      %v1169 = vmul.f32 %v1149, %v1159
      %v1170 = vmul.f32 %v1150, %v1159
      %v1171 = vmul.f32 %v1151, %v1159
      %v1172 = vmul.f32 %v1152, %v1159
      %v1173 = vmul.f32 %v1153, %v1159
      %v1174 = vmul.f32 %v1154, %v1159
      %v1175 = vmul.f32 %v1155, %v1159
      %v1176 = vmul.f32 %v1156, %v1159
      %v1177 = vld [vmem:[%s3] sm:$0x1]
      %v1179 = vperm.slane %v1177, 0
      %v1181 = vadd.f32 %v1161, %v1179
      %v1182 = vadd.f32 %v1162, %v1179
      %v1183 = vadd.f32 %v1163, %v1179
      %v1184 = vadd.f32 %v1164, %v1179
      %v1185 = vadd.f32 %v1165, %v1179
      %v1186 = vadd.f32 %v1166, %v1179
      %v1187 = vadd.f32 %v1167, %v1179
      %v1188 = vadd.f32 %v1168, %v1179
      %v1189 = vadd.f32 %v1169, %v1179
      %v1190 = vadd.f32 %v1170, %v1179
      %v1191 = vadd.f32 %v1171, %v1179
      %v1192 = vadd.f32 %v1172, %v1179
      %v1193 = vadd.f32 %v1173, %v1179
      %v1194 = vadd.f32 %v1174, %v1179
      %v1195 = vadd.f32 %v1175, %v1179
      %v1196 = vadd.f32 %v1176, %v1179
      %v1197 = vmax.f32 %v1181, 0.0
      %v1198 = vmax.f32 %v1182, 0.0
      %v1199 = vmax.f32 %v1183, 0.0
      %v1200 = vmax.f32 %v1184, 0.0
      %v1201 = vmax.f32 %v1185, 0.0
      %v1202 = vmax.f32 %v1186, 0.0
      %v1203 = vmax.f32 %v1187, 0.0
      %v1204 = vmax.f32 %v1188, 0.0
      %v1205 = vmax.f32 %v1189, 0.0
      %v1206 = vmax.f32 %v1190, 0.0
      %v1207 = vmax.f32 %v1191, 0.0
      %v1208 = vmax.f32 %v1192, 0.0
      %v1209 = vmax.f32 %v1193, 0.0
      %v1210 = vmax.f32 %v1194, 0.0
      %v1211 = vmax.f32 %v1195, 0.0
      %v1212 = vmax.f32 %v1196, 0.0
      %v1213 = vpack.c.bf16 %v1198, %v1197
      %v1214 = vpack.c.bf16 %v1200, %v1199
      %v1215 = vpack.c.bf16 %v1202, %v1201
      %v1216 = vpack.c.bf16 %v1204, %v1203
      %v1217 = vpack.c.bf16 %v1206, %v1205
      %v1218 = vpack.c.bf16 %v1208, %v1207
      %v1219 = vpack.c.bf16 %v1210, %v1209
      %v1220 = vpack.c.bf16 %v1212, %v1211
      %v1221 = vld [vmem:[%s4] sm:$0x3]
      %v1222 = vld [vmem:[%s5] sm:$0x1]
      %v1224 = vperm.slane %v1222, 0
      %vm1226 = vcmask 31744
      %v1228 = vsel %vm1226, %v1213, 0
      %v1231 = vsel %vm1226, %v1214, 0
      %v1234 = vsel %vm1226, %v1215, 0
      %v1237 = vsel %vm1226, %v1216, 0
      %v1240 = vsel %vm1226, %v1217, 0
      %v1243 = vsel %vm1226, %v1218, 0
      %v1246 = vsel %vm1226, %v1219, 0
      %v1249 = vsel %vm1226, %v1220, 0
      %vm1251 = vcmask 1041408
      %v1253 = vsel %vm1251, %v1221, 0
      %1255 = vmatpush.bf16.msra.mxu0 0
      %1256 = vmatpush.bf16.msra.mxu0 0
      %1257 = vmatpush.bf16.msra.mxu0 0
      %1258 = vmatpush.bf16.msra.mxu0 0
      %1259 = vmatpush.bf16.msra.mxu0 0
      %1260 = vmatpush.bf16.msra.mxu0 0
      %1261 = vmatpush.bf16.msra.mxu0 0
      %1262 = vmatpush.bf16.msra.mxu0 %v1253
      %1263 = vmatmul.bf16.gmra.mxu0 %v1228
      %v1264 = vpop.f32.mrf.mxu0
      %v1265 = vadd.f32 %v1224, %v1264
      %v1266 = vpop.f32.mrf.mxu0
      %v1267 = vadd.f32 %v1224, %v1266
      %1268 = vmatmul.bf16.gmra.mxu0 %v1231
      %v1269 = vpop.f32.mrf.mxu0
      %v1270 = vadd.f32 %v1224, %v1269
      %v1271 = vpop.f32.mrf.mxu0
      %v1272 = vadd.f32 %v1224, %v1271
      %1273 = vmatmul.bf16.gmra.mxu0 %v1234
      %v1274 = vpop.f32.mrf.mxu0
      %v1275 = vadd.f32 %v1224, %v1274
      %v1276 = vpop.f32.mrf.mxu0
      %v1277 = vadd.f32 %v1224, %v1276
      %1278 = vmatmul.bf16.gmra.mxu0 %v1237
      %v1279 = vpop.f32.mrf.mxu0
      %v1280 = vadd.f32 %v1224, %v1279
      %v1281 = vpop.f32.mrf.mxu0
      %v1282 = vadd.f32 %v1224, %v1281
      %1283 = vmatmul.bf16.gmra.mxu0 %v1240
      %v1284 = vpop.f32.mrf.mxu0
      %v1285 = vadd.f32 %v1224, %v1284
      %v1286 = vpop.f32.mrf.mxu0
      %v1287 = vadd.f32 %v1224, %v1286
      %1288 = vmatmul.bf16.gmra.mxu0 %v1243
      %v1289 = vpop.f32.mrf.mxu0
      %v1290 = vadd.f32 %v1224, %v1289
      %v1291 = vpop.f32.mrf.mxu0
      %v1292 = vadd.f32 %v1224, %v1291
      %1293 = vmatmul.bf16.gmra.mxu0 %v1246
      %v1294 = vpop.f32.mrf.mxu0
      %v1295 = vadd.f32 %v1224, %v1294
      %v1296 = vpop.f32.mrf.mxu0
      %v1297 = vadd.f32 %v1224, %v1296
      %1298 = vmatmul.bf16.gmra.mxu0 %v1249
      %v1299 = vpop.f32.mrf.mxu0
      %v1300 = vadd.f32 %v1224, %v1299
      %v1301 = vpop.f32.mrf.mxu0
      %v1302 = vadd.f32 %v1224, %v1301
      %1303 = vdwg.mxu0
      %1304 = vst [vmem:[%s287] sm:$0xff] %v1265
      %1305 = vst [vmem:[%s287 + $0x8] sm:$0xff] %v1267
      %1306 = vst [vmem:[%s287 + $0x10] sm:$0xff] %v1270
      %1307 = vst [vmem:[%s287 + $0x18] sm:$0xff] %v1272
      %1308 = vst [vmem:[%s287 + $0x20] sm:$0xff] %v1275
      %1309 = vst [vmem:[%s287 + $0x28] sm:$0xff] %v1277
      %1310 = vst [vmem:[%s287 + $0x30] sm:$0xff] %v1280
      %1311 = vst [vmem:[%s287 + $0x38] sm:$0xff] %v1282
      %1312 = vst [vmem:[%s287 + $0x40] sm:$0xff] %v1285
      %1313 = vst [vmem:[%s287 + $0x48] sm:$0xff] %v1287
      %1314 = vst [vmem:[%s287 + $0x50] sm:$0xff] %v1290
      %1315 = vst [vmem:[%s287 + $0x58] sm:$0xff] %v1292
      %1316 = vst [vmem:[%s287 + $0x60] sm:$0xff] %v1295
      %1317 = vst [vmem:[%s287 + $0x68] sm:$0xff] %v1297
      %1318 = vst [vmem:[%s287 + $0x70] sm:$0xff] %v1300
      %1319 = vst [vmem:[%s287 + $0x78] sm:$0xff] %v1302
      %p1320 = scmp.lt.s32.totalorder %s21, 1
      %s1321 = scalar_select %p1320, %s21, 1
      %p1322 = scmp.lt.s32.totalorder %s22, 1
      %s1323 = scalar_select %p1322, %s22, 1
      %s1324 = smul.addr %s1323, 16
      %s1325 = smul.addr %s1321, 32
      %s1326 = sadd.s32 %s1324, %s1325
      %s1327 = smul.addr %s1326, 8
      %s1328 = scalar_lea.vmem %s6, %s1327
      // Predicated region
      $region45: #{fcn_head.1} parent=43 // pred_check
        %p1329 = pneg %p182
      $region46: #{fcn_head.1} parent=43 // pred_check_branch
        %1331 = sbr.rel (%p1329) target = $region48
      $region47: #{fcn_head.1} parent=43 // pred_region
        _
      $region48: #{fcn_head.1} parent=43 // pred_fallthru
        _
    $region44: #{fcn_head.1} parent=5 // pred_fallthru
      _
    %p1332 = scmp.le.s32.totalorder 2, %s12
    // Predicated region
    $region49: #{fcn_head.1} parent=5 // pred_check
      %p1333 = pneg %p1332
    $region50: #{fcn_head.1} parent=5 // pred_check_branch
      %1335 = sbr.rel (%p1333) target = $region52
    $region51: #{fcn_head.1} parent=5 // pred_region
      %s1336 = ssub.s32 %s12, 2
      // Predicated region
      $region53: #{fcn_head.1} parent=51 // pred_check
        %p1337 = pneg %p188
      $region54: #{fcn_head.1} parent=51 // pred_check_branch
        %1339 = sbr.rel (%p1337) target = $region56
      $region55: #{fcn_head.1} parent=51 // pred_region
        %p1340 = scmp.lt.s32.totalorder %s23, 1
        %s1341 = scalar_select %p1340, %s23, 1
        %p1342 = scmp.lt.s32.totalorder %s24, 1
        %s1343 = scalar_select %p1342, %s24, 1
        %s1344 = smul.addr %s1343, 16
        %s1345 = smul.addr %s1341, 32
        %s1346 = sadd.s32 %s1344, %s1345
        %s1347 = smul.addr %s1346, 8
        %s1348 = scalar_lea.vmem %s6, %s1347
      $region56: #{fcn_head.1} parent=51 // pred_fallthru
        _
    $region52: #{fcn_head.1} parent=5 // pred_fallthru
      _
  $region6: #{fcn_head.1} parent=0 // loop_footer
    %s16 = sadd.s32 1, %s12
  $region7: #{fcn_head.1} parent=0 // loop_footer_branch
    %11 = sbr.rel target = $region3
  $region8: #{fcn_head.1} parent=0 // loop_exit
    _

</llo_original>
